<compile_context>
chip_gen: v6e
topology: v6e:2x2x1
jax: 0.10.0
libtpu: 0.0.40
codegen_flags: <defaults>
</compile_context>

<pallas_src>
import jax
import jax.numpy as jnp
from jax.experimental import pallas as pl
from jax.experimental.pallas import tpu as pltpu


def _round_up(x: int, m: int) -> int:
    return ((x + m - 1) // m) * m


def value_net_kernel(x_ref, w1_ref, b1_ref, w2_ref, b2_ref, w3_ref, b3_ref, o_ref):
    """One batch tile of the 3-layer MLP.

    x_ref : (TB, S_p)   bf16  state tile (batch -> sublanes, features -> lanes)
    w1/w2 : bf16 (in, out) weights (MXU inputs, f32 accumulation)
    w3    : (1, H_p) f32 row (last layer is done on the VPU/XLU)
    b*    : f32 biases
    o_ref : (TB, 1) f32 output tile
    """
    # layer 1: relu(x @ W1 + b1) -- bf16 MXU matmul, f32 accum, f32 VPU epilogue
    h = jnp.dot(x_ref[...], w1_ref[...], preferred_element_type=jnp.float32)
    h = jnp.maximum(h + b1_ref[...], 0.0)
    # layer 2: relu(h @ W2 + b2)
    h = jnp.dot(h.astype(jnp.bfloat16), w2_ref[...], preferred_element_type=jnp.float32)
    h = jnp.maximum(h + b2_ref[...], 0.0)
    # layer 3: (TB,H)@(H,1) would waste 127/128 MXU result lanes ->
    # VPU multiply + lane reduction instead.
    out = jnp.sum(h * w3_ref[...], axis=-1, keepdims=True) + b3_ref[...]
    o_ref[...] = out.astype(o_ref.dtype)


def value_network_forward(state, w1, b1, w2, b2, w3, b3, *, block_b=256):
    """ValueNetwork forward: relu(x@W1+b1) -> relu(.@W2+b2) -> .@W3+b3."""
    B, S = state.shape
    H1 = w1.shape[1]
    H2 = w2.shape[1]
    assert w2.shape[0] == H1 and w3.shape == (H2, 1)

    # Pad feature dims to the 128-lane width, batch to the tile size (>=8 sublanes).
    S_p = _round_up(S, 128)
    H1_p = _round_up(H1, 128)
    H2_p = _round_up(H2, 128)
    TB = min(block_b, _round_up(B, 8))
    B_p = _round_up(B, TB)
    grid = (B_p // TB,)

    f32, bf16 = jnp.float32, jnp.bfloat16
    x_p = jnp.zeros((B_p, S_p), bf16).at[:B, :S].set(state.astype(bf16))
    w1_p = jnp.zeros((S_p, H1_p), bf16).at[:S, :H1].set(w1.astype(bf16))
    b1_p = jnp.zeros((1, H1_p), f32).at[:, :H1].set(b1.reshape(1, H1).astype(f32))
    w2_p = jnp.zeros((H1_p, H2_p), bf16).at[:H1, :H2].set(w2.astype(bf16))
    b2_p = jnp.zeros((1, H2_p), f32).at[:, :H2].set(b2.reshape(1, H2).astype(f32))
    w3_p = jnp.zeros((1, H2_p), f32).at[:, :H2].set(w3.reshape(1, H2).astype(f32))
    b3_p = b3.reshape(1, 1).astype(f32)

    out_p = pl.pallas_call(
        value_net_kernel,
        out_shape=jax.ShapeDtypeStruct((B_p, 1), jnp.float32),
        grid=grid,
        in_specs=[
            pl.BlockSpec((TB, S_p), lambda i: (i, 0)),      # state: new tile per step
            pl.BlockSpec((S_p, H1_p), lambda i: (0, 0)),    # weights/biases: constant
            pl.BlockSpec((1, H1_p), lambda i: (0, 0)),      #   block index -> fetched
            pl.BlockSpec((H1_p, H2_p), lambda i: (0, 0)),   #   once, VMEM-resident
            pl.BlockSpec((1, H2_p), lambda i: (0, 0)),
            pl.BlockSpec((1, H2_p), lambda i: (0, 0)),
            pl.BlockSpec((1, 1), lambda i: (0, 0)),
        ],
        out_specs=pl.BlockSpec((TB, 1), lambda i: (i, 0)),
        compiler_params=pltpu.CompilerParams(
            # Batch tiles are independent -> shard the grid across TensorCores
            # (v7x megacore); weights are reused from VMEM on every step.
            dimension_semantics=("parallel",),
        ),
    )(x_p, w1_p, b1_p, w2_p, b2_p, w3_p, b3_p)
    return out_p[:B]


def xavier_uniform(key, fan_in, fan_out, dtype=jnp.float32):
    # Matches torch.nn.init.xavier_uniform_ (gain=1), as used by weights_init_.
    limit = (6.0 / (fan_in + fan_out)) ** 0.5
    return jax.random.uniform(key, (fan_in, fan_out), dtype, minval=-limit, maxval=limit)


def init_value_network_params(key, state_dim, hidden_dim=256):
    k1, k2, k3 = jax.random.split(key, 3)
    w1 = xavier_uniform(k1, state_dim, hidden_dim)
    b1 = jnp.zeros((hidden_dim,), jnp.float32)
    w2 = xavier_uniform(k2, hidden_dim, hidden_dim)
    b2 = jnp.zeros((hidden_dim,), jnp.float32)
    w3 = xavier_uniform(k3, hidden_dim, 1)
    b3 = jnp.zeros((1,), jnp.float32)
    return w1, b1, w2, b2, w3, b3


def reference_forward(state, w1, b1, w2, b2, w3, b3, matmul_dtype=jnp.float32):
    """Pure-jnp reference. matmul_dtype=bf16 mimics the kernel's MXU precision."""
    b1r, b2r, b3r = b1.reshape(1, -1), b2.reshape(1, -1), b3.reshape(1, -1)
    h = jnp.dot(state.astype(matmul_dtype), w1.astype(matmul_dtype),
                preferred_element_type=jnp.float32)
    h = jnp.maximum(h + b1r, 0.0)
    h = jnp.dot(h.astype(matmul_dtype), w2.astype(matmul_dtype),
                preferred_element_type=jnp.float32)
    h = jnp.maximum(h + b2r, 0.0)
    return jnp.dot(h, w3.astype(jnp.float32), preferred_element_type=jnp.float32) + b3r


if __name__ == "__main__":
    key = jax.random.PRNGKey(0)
    k_params, k_state, k_small, k_b1, k_b2, k_b3 = jax.random.split(key, 6)

    # Small SAC-style sizes: MuJoCo-ish state_dim, the module's default hidden_dim=256.
    state_dim, hidden_dim = 17, 256
    batch = 64

    w1, b1, w2, b2, w3, b3 = init_value_network_params(k_params, state_dim, hidden_dim)
    # weights_init_ zeroes the biases; use small non-zero ones here so the
    # bias-broadcast path is actually exercised (same forward semantics).
    b1 = 0.05 * jax.random.normal(k_b1, b1.shape, jnp.float32)
    b2 = 0.05 * jax.random.normal(k_b2, b2.shape, jnp.float32)
    b3 = 0.05 * jax.random.normal(k_b3, b3.shape, jnp.float32)

    state = jax.random.normal(k_state, (batch, state_dim), jnp.float32)

    fwd = jax.jit(value_network_forward)

    out = jax.block_until_ready(fwd(state, w1, b1, w2, b2, w3, b3))
    assert out.shape == (batch, 1), out.shape

    # Tight check vs a reference with the same bf16-input / f32-accum precision.
    ref_bf16 = reference_forward(state, w1, b1, w2, b2, w3, b3, matmul_dtype=jnp.bfloat16)
    assert jnp.allclose(out, ref_bf16, atol=1e-3, rtol=1e-3), "mismatch vs bf16 reference"
    # Loose check vs the pure-f32 (PyTorch-equivalent) math.
    ref_f32 = reference_forward(state, w1, b1, w2, b2, w3, b3)
    assert jnp.allclose(out, ref_f32, atol=5e-2, rtol=5e-2), "mismatch vs f32 reference"

    # Tiny-batch path (single grid step, sublane-rounded tile).
    small = jax.random.normal(k_small, (8, state_dim), jnp.float32)
    out_small = jax.block_until_ready(fwd(small, w1, b1, w2, b2, w3, b3))
    assert out_small.shape == (8, 1), out_small.shape
    ref_small = reference_forward(small, w1, b1, w2, b2, w3, b3)
    assert jnp.allclose(out_small, ref_small, atol=5e-2, rtol=5e-2), "mismatch (small batch)"

    print("KERNEL_OK")
</pallas_src>

<mosaic_0001>
module attributes {stable_mosaic.version = 11 : i64} {
  func.func @value_net_kernel(%arg0: i32, %arg1: memref<64x128xbf16, #tpu.memory_space<vmem>>, %arg2: memref<128x256xbf16, #tpu.memory_space<vmem>>, %arg3: memref<1x256xf32, #tpu.memory_space<vmem>>, %arg4: memref<256x256xbf16, #tpu.memory_space<vmem>>, %arg5: memref<1x256xf32, #tpu.memory_space<vmem>>, %arg6: memref<1x256xf32, #tpu.memory_space<vmem>>, %arg7: memref<1x1xf32, #tpu.memory_space<vmem>>, %arg8: memref<64x1xf32, #tpu.memory_space<vmem>>) attributes {dimension_semantics = [#tpu.dimension_semantics<parallel>], iteration_bounds = array<i64: 1>, scalar_prefetch = 0 : i64, scratch_operands = 0 : i64, tpu.core_type = #tpu.core_type<tc>, window_params = [{transform_indices = @transform_0, window_bounds = array<i64: 64, 128>}, {pipeline_mode = #tpu.pipeline_mode<synchronous>, transform_indices = @transform_1, window_bounds = array<i64: 128, 256>}, {pipeline_mode = #tpu.pipeline_mode<synchronous>, transform_indices = @transform_2, window_bounds = array<i64: 1, 256>}, {pipeline_mode = #tpu.pipeline_mode<synchronous>, transform_indices = @transform_3, window_bounds = array<i64: 256, 256>}, {pipeline_mode = #tpu.pipeline_mode<synchronous>, transform_indices = @transform_4, window_bounds = array<i64: 1, 256>}, {pipeline_mode = #tpu.pipeline_mode<synchronous>, transform_indices = @transform_5, window_bounds = array<i64: 1, 256>}, {pipeline_mode = #tpu.pipeline_mode<synchronous>, transform_indices = @transform_6, window_bounds = array<i64: 1, 1>}, {transform_indices = @transform_7, window_bounds = array<i64: 64, 1>}]} {
    %c0 = arith.constant 0 : index
    %c0_0 = arith.constant 0 : index
    %0 = vector.load %arg1[%c0, %c0_0] : memref<64x128xbf16, #tpu.memory_space<vmem>>, vector<64x128xbf16>
    %c0_1 = arith.constant 0 : index
    %c0_2 = arith.constant 0 : index
    %1 = vector.load %arg2[%c0_1, %c0_2] : memref<128x256xbf16, #tpu.memory_space<vmem>>, vector<128x256xbf16>
    %cst = arith.constant dense<0.000000e+00> : vector<64x256xf32>
    %2 = tpu.matmul %0, %1, %cst {dimension_numbers = #tpu.dot_dimension_numbers<[1], [0], [0], [1], [0, 0, 1, 1], [], []>} : vector<64x128xbf16>, vector<128x256xbf16>, vector<64x256xf32> -> vector<64x256xf32>
    %c0_3 = arith.constant 0 : index
    %c0_4 = arith.constant 0 : index
    %3 = vector.load %arg3[%c0_3, %c0_4] : memref<1x256xf32, #tpu.memory_space<vmem>>, vector<1x256xf32>
    %4 = vector.broadcast %3 : vector<1x256xf32> to vector<64x256xf32>
    %5 = arith.addf %2, %4 : vector<64x256xf32>
    %cst_5 = arith.constant 0.000000e+00 : f32
    %6 = vector.broadcast %cst_5 : f32 to vector<64x256xf32>
    %7 = arith.maximumf %5, %6 : vector<64x256xf32>
    %8 = arith.truncf %7 : vector<64x256xf32> to vector<64x256xbf16>
    %c0_6 = arith.constant 0 : index
    %c0_7 = arith.constant 0 : index
    %9 = vector.load %arg4[%c0_6, %c0_7] : memref<256x256xbf16, #tpu.memory_space<vmem>>, vector<256x256xbf16>
    %cst_8 = arith.constant dense<0.000000e+00> : vector<64x256xf32>
    %10 = tpu.matmul %8, %9, %cst_8 {dimension_numbers = #tpu.dot_dimension_numbers<[1], [0], [0], [1], [0, 0, 1, 1], [], []>} : vector<64x256xbf16>, vector<256x256xbf16>, vector<64x256xf32> -> vector<64x256xf32>
    %c0_9 = arith.constant 0 : index
    %c0_10 = arith.constant 0 : index
    %11 = vector.load %arg5[%c0_9, %c0_10] : memref<1x256xf32, #tpu.memory_space<vmem>>, vector<1x256xf32>
    %12 = vector.broadcast %11 : vector<1x256xf32> to vector<64x256xf32>
    %13 = arith.addf %10, %12 : vector<64x256xf32>
    %cst_11 = arith.constant 0.000000e+00 : f32
    %14 = vector.broadcast %cst_11 : f32 to vector<64x256xf32>
    %15 = arith.maximumf %13, %14 : vector<64x256xf32>
    %c0_12 = arith.constant 0 : index
    %c0_13 = arith.constant 0 : index
    %16 = vector.load %arg6[%c0_12, %c0_13] : memref<1x256xf32, #tpu.memory_space<vmem>>, vector<1x256xf32>
    %17 = vector.broadcast %16 : vector<1x256xf32> to vector<64x256xf32>
    %18 = arith.mulf %15, %17 : vector<64x256xf32>
    %cst_14 = arith.constant dense<0.000000e+00> : vector<64xf32>
    %19 = vector.multi_reduction <add>, %18, %cst_14 [1] : vector<64x256xf32> to vector<64xf32>
    %20 = vector.shape_cast %19 : vector<64xf32> to vector<64x1xf32>
    %c0_15 = arith.constant 0 : index
    %c0_16 = arith.constant 0 : index
    %21 = vector.load %arg7[%c0_15, %c0_16] : memref<1x1xf32, #tpu.memory_space<vmem>>, vector<1x1xf32>
    %22 = vector.broadcast %21 : vector<1x1xf32> to vector<64x1xf32>
    %23 = arith.addf %20, %22 : vector<64x1xf32>
    %c0_17 = arith.constant 0 : index
    %c0_18 = arith.constant 0 : index
    %24 = vector.load %arg8[%c0_17, %c0_18] : memref<64x1xf32, #tpu.memory_space<vmem>>, vector<64x1xf32>
    tpu.vector_store %arg8[%c0_17, %c0_18], %23 {strides = array<i32>} : memref<64x1xf32, #tpu.memory_space<vmem>>, vector<64x1xf32>,
    return
  }
  func.func @transform_0(%arg0: i32) -> (i32, i32) {
    %c0_i32 = arith.constant 0 : i32
    %c0_i32_0 = arith.constant 0 : i32
    return %arg0, %c0_i32 : i32, i32
  }
  func.func @transform_1(%arg0: i32) -> (i32, i32) {
    %c0_i32 = arith.constant 0 : i32
    %c0_i32_0 = arith.constant 0 : i32
    %c0_i32_1 = arith.constant 0 : i32
    return %c0_i32, %c0_i32_0 : i32, i32
  }
  func.func @transform_2(%arg0: i32) -> (i32, i32) {
    %c0_i32 = arith.constant 0 : i32
    %c0_i32_0 = arith.constant 0 : i32
    %c0_i32_1 = arith.constant 0 : i32
    return %c0_i32, %c0_i32_0 : i32, i32
  }
  func.func @transform_3(%arg0: i32) -> (i32, i32) {
    %c0_i32 = arith.constant 0 : i32
    %c0_i32_0 = arith.constant 0 : i32
    %c0_i32_1 = arith.constant 0 : i32
    return %c0_i32, %c0_i32_0 : i32, i32
  }
  func.func @transform_4(%arg0: i32) -> (i32, i32) {
    %c0_i32 = arith.constant 0 : i32
    %c0_i32_0 = arith.constant 0 : i32
    %c0_i32_1 = arith.constant 0 : i32
    return %c0_i32, %c0_i32_0 : i32, i32
  }
  func.func @transform_5(%arg0: i32) -> (i32, i32) {
    %c0_i32 = arith.constant 0 : i32
    %c0_i32_0 = arith.constant 0 : i32
    %c0_i32_1 = arith.constant 0 : i32
    return %c0_i32, %c0_i32_0 : i32, i32
  }
  func.func @transform_6(%arg0: i32) -> (i32, i32) {
    %c0_i32 = arith.constant 0 : i32
    %c0_i32_0 = arith.constant 0 : i32
    %c0_i32_1 = arith.constant 0 : i32
    return %c0_i32, %c0_i32_0 : i32, i32
  }
  func.func @transform_7(%arg0: i32) -> (i32, i32) {
    %c0_i32 = arith.constant 0 : i32
    %c0_i32_0 = arith.constant 0 : i32
    return %arg0, %c0_i32 : i32, i32
  }
}

</mosaic_0001>

<llo_original>
// kernel: value_network_forward.1
$region0: #{value_network_forward.1}
  #allocation0 [shape = 'u32[]', space=smem, size = 0x4, offset = 0x4, fixed_abs, tag = 'smem constant byte address 0x4 - core index']
  #allocation1 [shape = 'u32[144,128]{1,0:T(1,128)}', space=vmem, size = 0x12000, scoped, tag = 'internal scratch']
  #allocation2 [shape = 'f32[1,1]{1,0:T(1,128)S(1)}', space=vmem, size = 0x200, scoped, tag = 'scoped memory for value_network_forward.1']
  %s0 = inlined_call_operand.vmem [shape: bf16[64,128], index: 0, kind: input, shape index: {}]
  %s1 = inlined_call_operand.vmem [shape: bf16[128,256], index: 1, kind: input, shape index: {}]
  %s2 = inlined_call_operand.vmem [shape: f32[1,256], index: 2, kind: input, shape index: {}]
  %s3 = inlined_call_operand.vmem [shape: bf16[256,256], index: 3, kind: input, shape index: {}]
  %s4 = inlined_call_operand.vmem [shape: f32[1,256], index: 4, kind: input, shape index: {}]
  %s5 = inlined_call_operand.vmem [shape: f32[1,256], index: 5, kind: input, shape index: {}]
  %s6 = inlined_call_operand.<no memory space> [shape: f32[1,1], index: 6, kind: input, shape index: {}]
  %s7 = inlined_call_operand.vmem [shape: f32[64,1], index: 7, kind: output, shape index: {}]
  %s8 = sld [smem:[#allocation0]]
  $region38: #{value_network_forward.1} parent=0
    _
  %s10 = ssub.s32 1, %s8
  %s11 = scalar_select 0, %s10, %s8
  %v12 = vstv %s6
  %13 = vst [vmem:[#allocation2] sm:$0x1] %v12
  // Predicated region
  $region2: #{value_network_forward.1} parent=0 // pred_check
    _
  $region3: #{value_network_forward.1} parent=0 // pred_check_branch
    %15 = sbr.rel (0) target = $region5
  $region4: #{value_network_forward.1} parent=0 // pred_region
    _
  $region5: #{value_network_forward.1} parent=0 // pred_fallthru
    _
  // Predicated region
  $region6: #{value_network_forward.1} parent=0 // pred_check
    _
  $region7: #{value_network_forward.1} parent=0 // pred_check_branch
    %17 = sbr.rel (0) target = $region9
  $region8: #{value_network_forward.1} parent=0 // pred_region
    _
  $region9: #{value_network_forward.1} parent=0 // pred_fallthru
    _
  // Predicated region
  $region10: #{value_network_forward.1} parent=0 // pred_check
    _
  $region11: #{value_network_forward.1} parent=0 // pred_check_branch
    %19 = sbr.rel (0) target = $region13
  $region12: #{value_network_forward.1} parent=0 // pred_region
    _
  $region13: #{value_network_forward.1} parent=0 // pred_fallthru
    _
  // Predicated region
  $region14: #{value_network_forward.1} parent=0 // pred_check
    _
  $region15: #{value_network_forward.1} parent=0 // pred_check_branch
    %21 = sbr.rel (0) target = $region17
  $region16: #{value_network_forward.1} parent=0 // pred_region
    _
  $region17: #{value_network_forward.1} parent=0 // pred_fallthru
    _
  // Predicated region
  $region18: #{value_network_forward.1} parent=0 // pred_check
    _
  $region19: #{value_network_forward.1} parent=0 // pred_check_branch
    %23 = sbr.rel (0) target = $region21
  $region20: #{value_network_forward.1} parent=0 // pred_region
    _
  $region21: #{value_network_forward.1} parent=0 // pred_fallthru
    _
  // Predicated region
  $region22: #{value_network_forward.1} parent=0 // pred_check
    _
  $region23: #{value_network_forward.1} parent=0 // pred_check_branch
    %25 = sbr.rel (0) target = $region25
  $region24: #{value_network_forward.1} parent=0 // pred_region
    _
  $region25: #{value_network_forward.1} parent=0 // pred_fallthru
    _
  // Predicated region
  $region26: #{value_network_forward.1} parent=0 // pred_check
    _
  $region27: #{value_network_forward.1} parent=0 // pred_check_branch
    %27 = sbr.rel (0) target = $region29
  $region28: #{value_network_forward.1} parent=0 // pred_region
    _
  $region29: #{value_network_forward.1} parent=0 // pred_fallthru
    _
  %v29 = vld [vmem:[%s0] sm:$0xf]
  %v30 = vld [vmem:[%s0 + $0x4] sm:$0xf]
  %v31 = vld [vmem:[%s0 + $0x8] sm:$0xf]
  %v32 = vld [vmem:[%s0 + $0xc] sm:$0xf]
  %v33 = vld [vmem:[%s0 + $0x10] sm:$0xf]
  %v34 = vld [vmem:[%s0 + $0x14] sm:$0xf]
  %v35 = vld [vmem:[%s0 + $0x18] sm:$0xf]
  %v36 = vld [vmem:[%s0 + $0x1c] sm:$0xf]
  %v37 = vld [vmem:[%s1] sm:$0xff]
  %v38 = vld [vmem:[%s1 + $0x8] sm:$0xff]
  %v39 = vld [vmem:[%s1 + $0x10] sm:$0xff]
  %v40 = vld [vmem:[%s1 + $0x18] sm:$0xff]
  %v41 = vld [vmem:[%s1 + $0x20] sm:$0xff]
  %v42 = vld [vmem:[%s1 + $0x28] sm:$0xff]
  %v43 = vld [vmem:[%s1 + $0x30] sm:$0xff]
  %v44 = vld [vmem:[%s1 + $0x38] sm:$0xff]
  %v45 = vld [vmem:[%s1 + $0x40] sm:$0xff]
  %v46 = vld [vmem:[%s1 + $0x48] sm:$0xff]
  %v47 = vld [vmem:[%s1 + $0x50] sm:$0xff]
  %v48 = vld [vmem:[%s1 + $0x58] sm:$0xff]
  %v49 = vld [vmem:[%s1 + $0x60] sm:$0xff]
  %v50 = vld [vmem:[%s1 + $0x68] sm:$0xff]
  %v51 = vld [vmem:[%s1 + $0x70] sm:$0xff]
  %v52 = vld [vmem:[%s1 + $0x78] sm:$0xff]
  %v53 = vld [vmem:[%s2] sm:$0x3]
  %v55 = vlaneseq
  %v56 = vshrl.u32 %v55, 7
  %v57 = vsub.s32 0, %v56
  %v58 = vrot.slane %v53, %v57
  %v59 = vlaneseq
  %v60 = vshrl.u32 %v59, 7
  %v61 = vsub.s32 1, %v60
  %v62 = vrot.slane %v53, %v61
  %v73 = vunpack.c.l.b16 %v29
  %v74 = vunpack.c.l.b16 %v30
  %v75 = vunpack.c.l.b16 %v31
  %v76 = vunpack.c.l.b16 %v32
  %v77 = vunpack.c.l.b16 %v33
  %v78 = vunpack.c.l.b16 %v34
  %v79 = vunpack.c.l.b16 %v35
  %v80 = vunpack.c.l.b16 %v36
  %v81 = vpack.c.b16 %v74, %v73
  %v82 = vpack.c.b16 %v76, %v75
  %v83 = vpack.c.b16 %v78, %v77
  %v84 = vpack.c.b16 %v80, %v79
  %v105 = vunpack.c.l.b16 %v37
  %v106 = vunpack.c.h.b16 %v37
  %v107 = vunpack.c.l.b16 %v38
  %v108 = vunpack.c.h.b16 %v38
  %v109 = vunpack.c.l.b16 %v39
  %v110 = vunpack.c.h.b16 %v39
  %v111 = vunpack.c.l.b16 %v40
  %v112 = vunpack.c.h.b16 %v40
  %v113 = vunpack.c.l.b16 %v41
  %v114 = vunpack.c.h.b16 %v41
  %v115 = vunpack.c.l.b16 %v42
  %v116 = vunpack.c.h.b16 %v42
  %v117 = vunpack.c.l.b16 %v43
  %v118 = vunpack.c.h.b16 %v43
  %v119 = vunpack.c.l.b16 %v44
  %v120 = vunpack.c.h.b16 %v44
  %v121 = vunpack.c.l.b16 %v45
  %v122 = vunpack.c.h.b16 %v45
  %v123 = vunpack.c.l.b16 %v46
  %v124 = vunpack.c.h.b16 %v46
  %v125 = vunpack.c.l.b16 %v47
  %v126 = vunpack.c.h.b16 %v47
  %v127 = vunpack.c.l.b16 %v48
  %v128 = vunpack.c.h.b16 %v48
  %v129 = vunpack.c.l.b16 %v49
  %v130 = vunpack.c.h.b16 %v49
  %v131 = vunpack.c.l.b16 %v50
  %v132 = vunpack.c.h.b16 %v50
  %v133 = vunpack.c.l.b16 %v51
  %v134 = vunpack.c.h.b16 %v51
  %v135 = vunpack.c.l.b16 %v52
  %v136 = vunpack.c.h.b16 %v52
  %v137 = vpack.c.b16 %v107, %v105
  %v138 = vpack.c.b16 %v108, %v106
  %v139 = vpack.c.b16 %v111, %v109
  %v140 = vpack.c.b16 %v112, %v110
  %v141 = vpack.c.b16 %v115, %v113
  %v142 = vpack.c.b16 %v116, %v114
  %v143 = vpack.c.b16 %v119, %v117
  %v144 = vpack.c.b16 %v120, %v118
  %v145 = vpack.c.b16 %v123, %v121
  %v146 = vpack.c.b16 %v124, %v122
  %v147 = vpack.c.b16 %v127, %v125
  %v148 = vpack.c.b16 %v128, %v126
  %v149 = vpack.c.b16 %v131, %v129
  %v150 = vpack.c.b16 %v132, %v130
  %v151 = vpack.c.b16 %v135, %v133
  %v152 = vpack.c.b16 %v136, %v134
  %169 = vmatprep.subr.bf16.mxu0 %v152
  %170 = vmatpush1.bf16.msra.mxu0 %v151
  %171 = vmatprep.subr.bf16.mxu0 %v150
  %172 = vmatpush1.bf16.msra.mxu0 %v149
  %173 = vmatprep.subr.bf16.mxu0 %v148
  %174 = vmatpush1.bf16.msra.mxu0 %v147
  %175 = vmatprep.subr.bf16.mxu0 %v146
  %176 = vmatpush1.bf16.msra.mxu0 %v145
  %177 = vmatprep.subr.bf16.mxu0 %v144
  %178 = vmatpush1.bf16.msra.mxu0 %v143
  %179 = vmatprep.subr.bf16.mxu0 %v142
  %180 = vmatpush1.bf16.msra.mxu0 %v141
  %181 = vmatprep.subr.bf16.mxu0 %v140
  %182 = vmatpush1.bf16.msra.mxu0 %v139
  %183 = vmatprep.subr.bf16.mxu0 %v138
  %184 = vmatpush1.bf16.msra.mxu0 %v137
  %185 = vmatprep.subr.bf16.mxu0 0
  %186 = vmatpush2.bf16.msra.mxu0 0
  %187 = vmatprep.subr.bf16.mxu0 0
  %188 = vmatpush2.bf16.msra.mxu0 0
  %189 = vmatprep.subr.bf16.mxu0 0
  %190 = vmatpush2.bf16.msra.mxu0 0
  %191 = vmatprep.subr.bf16.mxu0 0
  %192 = vmatpush2.bf16.msra.mxu0 0
  %193 = vmatprep.subr.bf16.mxu0 0
  %194 = vmatpush2.bf16.msra.mxu0 0
  %195 = vmatprep.subr.bf16.mxu0 0
  %196 = vmatpush2.bf16.msra.mxu0 0
  %197 = vmatprep.subr.bf16.mxu0 0
  %198 = vmatpush2.bf16.msra.mxu0 0
  %199 = vmatprep.subr.bf16.mxu0 0
  %200 = vmatpush2.bf16.msra.mxu0 0
  %201 = vmatprep.mubr.bf16.mxu0 0
  %202 = vmatmul.mubr.bf16.gmra.mxu0 %v81
  %v203 = vpop.f32.mrf.mxu0
  %v204 = vadd.f32 %v58, %v203
  %v205 = vpop.f32.mrf.mxu0
  %v206 = vadd.f32 %v62, %v205
  %v207 = vpop.f32.mrf.mxu0
  %v208 = vadd.f32 %v58, %v207
  %v209 = vpop.f32.mrf.mxu0
  %v210 = vadd.f32 %v62, %v209
  %211 = vmatprep.mubr.bf16.mxu0 0
  %212 = vmatmul.mubr.bf16.gmra.mxu0 %v82
  %v213 = vpop.f32.mrf.mxu0
  %v214 = vadd.f32 %v58, %v213
  %v215 = vpop.f32.mrf.mxu0
  %v216 = vadd.f32 %v62, %v215
  %v217 = vpop.f32.mrf.mxu0
  %v218 = vadd.f32 %v58, %v217
  %v219 = vpop.f32.mrf.mxu0
  %v220 = vadd.f32 %v62, %v219
  %221 = vmatprep.mubr.bf16.mxu0 0
  %222 = vmatmul.mubr.bf16.gmra.mxu0 %v83
  %v223 = vpop.f32.mrf.mxu0
  %v224 = vadd.f32 %v58, %v223
  %v225 = vpop.f32.mrf.mxu0
  %v226 = vadd.f32 %v62, %v225
  %v227 = vpop.f32.mrf.mxu0
  %v228 = vadd.f32 %v58, %v227
  %v229 = vpop.f32.mrf.mxu0
  %v230 = vadd.f32 %v62, %v229
  %231 = vmatprep.mubr.bf16.mxu0 0
  %232 = vmatmul.mubr.bf16.gmra.mxu0 %v84
  %v233 = vpop.f32.mrf.mxu0
  %v234 = vadd.f32 %v58, %v233
  %v235 = vpop.f32.mrf.mxu0
  %v236 = vadd.f32 %v62, %v235
  %v237 = vpop.f32.mrf.mxu0
  %v238 = vadd.f32 %v58, %v237
  %v239 = vpop.f32.mrf.mxu0
  %v240 = vadd.f32 %v62, %v239
  %241 = vdwg.mxu0
  %v242 = vmax.f32 %v204, 0.0
  %v243 = vmax.f32 %v206, 0.0
  %v244 = vmax.f32 %v208, 0.0
  %v245 = vmax.f32 %v210, 0.0
  %v246 = vmax.f32 %v214, 0.0
  %v247 = vmax.f32 %v216, 0.0
  %v248 = vmax.f32 %v218, 0.0
  %v249 = vmax.f32 %v220, 0.0
  %v250 = vmax.f32 %v224, 0.0
  %v251 = vmax.f32 %v226, 0.0
  %v252 = vmax.f32 %v228, 0.0
  %v253 = vmax.f32 %v230, 0.0
  %v254 = vmax.f32 %v234, 0.0
  %v255 = vmax.f32 %v236, 0.0
  %v256 = vmax.f32 %v238, 0.0
  %v257 = vmax.f32 %v240, 0.0
  %v258 = vpack.c.bf16 %v244, %v242
  %v259 = vpack.c.bf16 %v245, %v243
  %v260 = vpack.c.bf16 %v248, %v246
  %v261 = vpack.c.bf16 %v249, %v247
  %v262 = vpack.c.bf16 %v252, %v250
  %v263 = vpack.c.bf16 %v253, %v251
  %v264 = vpack.c.bf16 %v256, %v254
  %v265 = vpack.c.bf16 %v257, %v255
  %v266 = vld [vmem:[%s3] sm:$0xff]
  %v267 = vld [vmem:[%s3 + $0x8] sm:$0xff]
  %v268 = vld [vmem:[%s3 + $0x10] sm:$0xff]
  %v269 = vld [vmem:[%s3 + $0x18] sm:$0xff]
  %v270 = vld [vmem:[%s3 + $0x20] sm:$0xff]
  %v271 = vld [vmem:[%s3 + $0x28] sm:$0xff]
  %v272 = vld [vmem:[%s3 + $0x30] sm:$0xff]
  %v273 = vld [vmem:[%s3 + $0x38] sm:$0xff]
  %v274 = vld [vmem:[%s3 + $0x40] sm:$0xff]
  %v275 = vld [vmem:[%s3 + $0x48] sm:$0xff]
  %v276 = vld [vmem:[%s3 + $0x50] sm:$0xff]
  %v277 = vld [vmem:[%s3 + $0x58] sm:$0xff]
  %v278 = vld [vmem:[%s3 + $0x60] sm:$0xff]
  %v279 = vld [vmem:[%s3 + $0x68] sm:$0xff]
  %v280 = vld [vmem:[%s3 + $0x70] sm:$0xff]
  %v281 = vld [vmem:[%s3 + $0x78] sm:$0xff]
  %v282 = vld [vmem:[%s3 + $0x80] sm:$0xff]
  %v283 = vld [vmem:[%s3 + $0x88] sm:$0xff]
  %v284 = vld [vmem:[%s3 + $0x90] sm:$0xff]
  %v285 = vld [vmem:[%s3 + $0x98] sm:$0xff]
  %v286 = vld [vmem:[%s3 + $0xa0] sm:$0xff]
  %v287 = vld [vmem:[%s3 + $0xa8] sm:$0xff]
  %v288 = vld [vmem:[%s3 + $0xb0] sm:$0xff]
  %v289 = vld [vmem:[%s3 + $0xb8] sm:$0xff]
  %v290 = vld [vmem:[%s3 + $0xc0] sm:$0xff]
  %v291 = vld [vmem:[%s3 + $0xc8] sm:$0xff]
  %v292 = vld [vmem:[%s3 + $0xd0] sm:$0xff]
  %v293 = vld [vmem:[%s3 + $0xd8] sm:$0xff]
  %v294 = vld [vmem:[%s3 + $0xe0] sm:$0xff]
  %v295 = vld [vmem:[%s3 + $0xe8] sm:$0xff]
  %v296 = vld [vmem:[%s3 + $0xf0] sm:$0xff]
  %v297 = vld [vmem:[%s3 + $0xf8] sm:$0xff]
  %v298 = vld [vmem:[%s4] sm:$0x3]
  %v300 = vlaneseq
  %v301 = vshrl.u32 %v300, 7
  %v302 = vsub.s32 0, %v301
  %v303 = vrot.slane %v298, %v302
  %v304 = vlaneseq
  %v305 = vshrl.u32 %v304, 7
  %v306 = vsub.s32 1, %v305
  %v307 = vrot.slane %v298, %v306
  %v342 = vunpack.c.l.b16 %v266
  %v343 = vunpack.c.h.b16 %v266
  %v344 = vunpack.c.l.b16 %v267
  %v345 = vunpack.c.h.b16 %v267
  %v346 = vunpack.c.l.b16 %v268
  %v347 = vunpack.c.h.b16 %v268
  %v348 = vunpack.c.l.b16 %v269
  %v349 = vunpack.c.h.b16 %v269
  %v350 = vunpack.c.l.b16 %v270
  %v351 = vunpack.c.h.b16 %v270
  %v352 = vunpack.c.l.b16 %v271
  %v353 = vunpack.c.h.b16 %v271
  %v354 = vunpack.c.l.b16 %v272
  %v355 = vunpack.c.h.b16 %v272
  %v356 = vunpack.c.l.b16 %v273
  %v357 = vunpack.c.h.b16 %v273
  %v358 = vunpack.c.l.b16 %v274
  %v359 = vunpack.c.h.b16 %v274
  %v360 = vunpack.c.l.b16 %v275
  %v361 = vunpack.c.h.b16 %v275
  %v362 = vunpack.c.l.b16 %v276
  %v363 = vunpack.c.h.b16 %v276
  %v364 = vunpack.c.l.b16 %v277
  %v365 = vunpack.c.h.b16 %v277
  %v366 = vunpack.c.l.b16 %v278
  %v367 = vunpack.c.h.b16 %v278
  %v368 = vunpack.c.l.b16 %v279
  %v369 = vunpack.c.h.b16 %v279
  %v370 = vunpack.c.l.b16 %v280
  %v371 = vunpack.c.h.b16 %v280
  %v372 = vunpack.c.l.b16 %v281
  %v373 = vunpack.c.h.b16 %v281
  %v374 = vunpack.c.l.b16 %v282
  %v375 = vunpack.c.h.b16 %v282
  %v376 = vunpack.c.l.b16 %v283
  %v377 = vunpack.c.h.b16 %v283
  %v378 = vunpack.c.l.b16 %v284
  %v379 = vunpack.c.h.b16 %v284
  %v380 = vunpack.c.l.b16 %v285
  %v381 = vunpack.c.h.b16 %v285
  %v382 = vunpack.c.l.b16 %v286
  %v383 = vunpack.c.h.b16 %v286
  %v384 = vunpack.c.l.b16 %v287
  %v385 = vunpack.c.h.b16 %v287
  %v386 = vunpack.c.l.b16 %v288
  %v387 = vunpack.c.h.b16 %v288
  %v388 = vunpack.c.l.b16 %v289
  %v389 = vunpack.c.h.b16 %v289
  %v390 = vunpack.c.l.b16 %v290
  %v391 = vunpack.c.h.b16 %v290
  %v392 = vunpack.c.l.b16 %v291
  %v393 = vunpack.c.h.b16 %v291
  %v394 = vunpack.c.l.b16 %v292
  %v395 = vunpack.c.h.b16 %v292
  %v396 = vunpack.c.l.b16 %v293
  %v397 = vunpack.c.h.b16 %v293
  %v398 = vunpack.c.l.b16 %v294
  %v399 = vunpack.c.h.b16 %v294
  %v400 = vunpack.c.l.b16 %v295
  %v401 = vunpack.c.h.b16 %v295
  %v402 = vunpack.c.l.b16 %v296
  %v403 = vunpack.c.h.b16 %v296
  %v404 = vunpack.c.l.b16 %v297
  %v405 = vunpack.c.h.b16 %v297
  %v406 = vpack.c.b16 %v344, %v342
  %v407 = vpack.c.b16 %v345, %v343
  %v408 = vpack.c.b16 %v348, %v346
  %v409 = vpack.c.b16 %v349, %v347
  %v410 = vpack.c.b16 %v352, %v350
  %v411 = vpack.c.b16 %v353, %v351
  %v412 = vpack.c.b16 %v356, %v354
  %v413 = vpack.c.b16 %v357, %v355
  %v414 = vpack.c.b16 %v360, %v358
  %v415 = vpack.c.b16 %v361, %v359
  %v416 = vpack.c.b16 %v364, %v362
  %v417 = vpack.c.b16 %v365, %v363
  %v418 = vpack.c.b16 %v368, %v366
  %v419 = vpack.c.b16 %v369, %v367
  %v420 = vpack.c.b16 %v372, %v370
  %v421 = vpack.c.b16 %v373, %v371
  %v422 = vpack.c.b16 %v376, %v374
  %v423 = vpack.c.b16 %v377, %v375
  %v424 = vpack.c.b16 %v380, %v378
  %v425 = vpack.c.b16 %v381, %v379
  %v426 = vpack.c.b16 %v384, %v382
  %v427 = vpack.c.b16 %v385, %v383
  %v428 = vpack.c.b16 %v388, %v386
  %v429 = vpack.c.b16 %v389, %v387
  %v430 = vpack.c.b16 %v392, %v390
  %v431 = vpack.c.b16 %v393, %v391
  %v432 = vpack.c.b16 %v396, %v394
  %v433 = vpack.c.b16 %v397, %v395
  %v434 = vpack.c.b16 %v400, %v398
  %v435 = vpack.c.b16 %v401, %v399
  %v436 = vpack.c.b16 %v404, %v402
  %v437 = vpack.c.b16 %v405, %v403
  %470 = vmatprep.subr.bf16.mxu0 %v421
  %471 = vmatpush1.bf16.msra.mxu0 %v420
  %472 = vmatprep.subr.bf16.mxu0 %v419
  %473 = vmatpush1.bf16.msra.mxu0 %v418
  %474 = vmatprep.subr.bf16.mxu0 %v417
  %475 = vmatpush1.bf16.msra.mxu0 %v416
  %476 = vmatprep.subr.bf16.mxu0 %v415
  %477 = vmatpush1.bf16.msra.mxu0 %v414
  %478 = vmatprep.subr.bf16.mxu0 %v413
  %479 = vmatpush1.bf16.msra.mxu0 %v412
  %480 = vmatprep.subr.bf16.mxu0 %v411
  %481 = vmatpush1.bf16.msra.mxu0 %v410
  %482 = vmatprep.subr.bf16.mxu0 %v409
  %483 = vmatpush1.bf16.msra.mxu0 %v408
  %484 = vmatprep.subr.bf16.mxu0 %v407
  %485 = vmatpush1.bf16.msra.mxu0 %v406
  %486 = vmatprep.subr.bf16.mxu0 %v437
  %487 = vmatpush2.bf16.msra.mxu0 %v436
  %488 = vmatprep.subr.bf16.mxu0 %v435
  %489 = vmatpush2.bf16.msra.mxu0 %v434
  %490 = vmatprep.subr.bf16.mxu0 %v433
  %491 = vmatpush2.bf16.msra.mxu0 %v432
  %492 = vmatprep.subr.bf16.mxu0 %v431
  %493 = vmatpush2.bf16.msra.mxu0 %v430
  %494 = vmatprep.subr.bf16.mxu0 %v429
  %495 = vmatpush2.bf16.msra.mxu0 %v428
  %496 = vmatprep.subr.bf16.mxu0 %v427
  %497 = vmatpush2.bf16.msra.mxu0 %v426
  %498 = vmatprep.subr.bf16.mxu0 %v425
  %499 = vmatpush2.bf16.msra.mxu0 %v424
  %500 = vmatprep.subr.bf16.mxu0 %v423
  %501 = vmatpush2.bf16.msra.mxu0 %v422
  %502 = vmatprep.mubr.bf16.mxu0 %v259
  %503 = vmatmul.mubr.bf16.gmra.mxu0 %v258
  %v504 = vpop.f32.mrf.mxu0
  %v505 = vadd.f32 %v303, %v504
  %v506 = vpop.f32.mrf.mxu0
  %v507 = vadd.f32 %v307, %v506
  %v508 = vpop.f32.mrf.mxu0
  %v509 = vadd.f32 %v303, %v508
  %v510 = vpop.f32.mrf.mxu0
  %v511 = vadd.f32 %v307, %v510
  %512 = vmatprep.mubr.bf16.mxu0 %v261
  %513 = vmatmul.mubr.bf16.gmra.mxu0 %v260
  %v514 = vpop.f32.mrf.mxu0
  %v515 = vadd.f32 %v303, %v514
  %v516 = vpop.f32.mrf.mxu0
  %v517 = vadd.f32 %v307, %v516
  %v518 = vpop.f32.mrf.mxu0
  %v519 = vadd.f32 %v303, %v518
  %v520 = vpop.f32.mrf.mxu0
  %v521 = vadd.f32 %v307, %v520
  %522 = vmatprep.mubr.bf16.mxu0 %v263
  %523 = vmatmul.mubr.bf16.gmra.mxu0 %v262
  %v524 = vpop.f32.mrf.mxu0
  %v525 = vadd.f32 %v303, %v524
  %v526 = vpop.f32.mrf.mxu0
  %v527 = vadd.f32 %v307, %v526
  %v528 = vpop.f32.mrf.mxu0
  %v529 = vadd.f32 %v303, %v528
  %v530 = vpop.f32.mrf.mxu0
  %v531 = vadd.f32 %v307, %v530
  %532 = vmatprep.mubr.bf16.mxu0 %v265
  %533 = vmatmul.mubr.bf16.gmra.mxu0 %v264
  %v534 = vpop.f32.mrf.mxu0
  %v535 = vadd.f32 %v303, %v534
  %v536 = vpop.f32.mrf.mxu0
  %v537 = vadd.f32 %v307, %v536
  %v538 = vpop.f32.mrf.mxu0
  %v539 = vadd.f32 %v303, %v538
  %v540 = vpop.f32.mrf.mxu0
  %v541 = vadd.f32 %v307, %v540
  %542 = vdwg.mxu0
  %v543 = vmax.f32 %v505, 0.0
  %v544 = vmax.f32 %v507, 0.0
  %v545 = vmax.f32 %v509, 0.0
  %v546 = vmax.f32 %v511, 0.0
  %v547 = vmax.f32 %v515, 0.0
  %v548 = vmax.f32 %v517, 0.0
  %v549 = vmax.f32 %v519, 0.0
  %v550 = vmax.f32 %v521, 0.0
  %v551 = vmax.f32 %v525, 0.0
  %v552 = vmax.f32 %v527, 0.0
  %v553 = vmax.f32 %v529, 0.0
  %v554 = vmax.f32 %v531, 0.0
  %v555 = vmax.f32 %v535, 0.0
  %v556 = vmax.f32 %v537, 0.0
  %v557 = vmax.f32 %v539, 0.0
  %v558 = vmax.f32 %v541, 0.0
  %v559 = vld [vmem:[%s5] sm:$0x3]
  %v561 = vlaneseq
  %v562 = vshrl.u32 %v561, 7
  %v563 = vsub.s32 0, %v562
  %v564 = vrot.slane %v559, %v563
  %v565 = vlaneseq
  %v566 = vshrl.u32 %v565, 7
  %v567 = vsub.s32 1, %v566
  %v568 = vrot.slane %v559, %v567
  %v571 = vmul.f32 %v543, %v564
  %v572 = vmul.f32 %v544, %v568
  %v573 = vmul.f32 %v545, %v564
  %v574 = vmul.f32 %v546, %v568
  %v575 = vmul.f32 %v547, %v564
  %v576 = vmul.f32 %v548, %v568
  %v577 = vmul.f32 %v549, %v564
  %v578 = vmul.f32 %v550, %v568
  %v579 = vmul.f32 %v551, %v564
  %v580 = vmul.f32 %v552, %v568
  %v581 = vmul.f32 %v553, %v564
  %v582 = vmul.f32 %v554, %v568
  %v583 = vmul.f32 %v555, %v564
  %v584 = vmul.f32 %v556, %v568
  %v585 = vmul.f32 %v557, %v564
  %v586 = vmul.f32 %v558, %v568
  %v587 = vadd.f32 %v571, %v572
  %588 = vadd.xlane.f32.xlu0 %v587
  %v589 = vpop.xlane.xlu0 %588
  %v590 = vadd.f32 %v573, %v574
  %591 = vadd.xlane.f32.xlu0 %v590
  %v592 = vpop.xlane.xlu0 %591
  %v593 = vadd.f32 %v575, %v576
  %594 = vadd.xlane.f32.xlu0 %v593
  %v595 = vpop.xlane.xlu0 %594
  %v596 = vadd.f32 %v577, %v578
  %597 = vadd.xlane.f32.xlu0 %v596
  %v598 = vpop.xlane.xlu0 %597
  %v599 = vadd.f32 %v579, %v580
  %600 = vadd.xlane.f32.xlu0 %v599
  %v601 = vpop.xlane.xlu0 %600
  %v602 = vadd.f32 %v581, %v582
  %603 = vadd.xlane.f32.xlu0 %v602
  %v604 = vpop.xlane.xlu0 %603
  %v605 = vadd.f32 %v583, %v584
  %606 = vadd.xlane.f32.xlu0 %v605
  %v607 = vpop.xlane.xlu0 %606
  %v608 = vadd.f32 %v585, %v586
  %609 = vadd.xlane.f32.xlu0 %v608
  %v610 = vpop.xlane.xlu0 %609
  %v611 = vld [vmem:[#allocation2] sm:$0x1]
  %v613 = vlaneseq
  %v614 = vshrl.u32 %v613, 7
  %v615 = vsub.s32 0, %v614
  %v616 = vrot.slane %v611, %v615
  %v618 = vadd.f32 %v589, %v616
  %v619 = vadd.f32 %v592, %v616
  %v620 = vadd.f32 %v595, %v616
  %v621 = vadd.f32 %v598, %v616
  %v622 = vadd.f32 %v601, %v616
  %v623 = vadd.f32 %v604, %v616
  %v624 = vadd.f32 %v607, %v616
  %v625 = vadd.f32 %v610, %v616
  %vm626 = vcmask 7168
  %627 = vst.msk [vmem:[%s7] sm:$0xff] %vm626, %v618
  %628 = vst.msk [vmem:[%s7 + $0x8] sm:$0xff] %vm626, %v619
  %629 = vst.msk [vmem:[%s7 + $0x10] sm:$0xff] %vm626, %v620
  %630 = vst.msk [vmem:[%s7 + $0x18] sm:$0xff] %vm626, %v621
  %631 = vst.msk [vmem:[%s7 + $0x20] sm:$0xff] %vm626, %v622
  %632 = vst.msk [vmem:[%s7 + $0x28] sm:$0xff] %vm626, %v623
  %633 = vst.msk [vmem:[%s7 + $0x30] sm:$0xff] %vm626, %v624
  %634 = vst.msk [vmem:[%s7 + $0x38] sm:$0xff] %vm626, %v625
  // Predicated region
  $region30: #{value_network_forward.1} parent=0 // pred_check
    _
  $region31: #{value_network_forward.1} parent=0 // pred_check_branch
    %636 = sbr.rel (0) target = $region33
  $region32: #{value_network_forward.1} parent=0 // pred_region
    _
  $region33: #{value_network_forward.1} parent=0 // pred_fallthru
    _
  // Predicated region
  $region34: #{value_network_forward.1} parent=0 // pred_check
    _
  $region35: #{value_network_forward.1} parent=0 // pred_check_branch
    %638 = sbr.rel (0) target = $region37
  $region36: #{value_network_forward.1} parent=0 // pred_region
    _
  $region37: #{value_network_forward.1} parent=0 // pred_fallthru
    _

</llo_original>
